<compile_context>
chip_gen: v6e
topology: v6e:2x2x1
jax: 0.10.0
libtpu: 0.0.40
codegen_flags: <defaults>
</compile_context>

<pallas_src>
import functools

import numpy as np

import jax
import jax.numpy as jnp
from jax.experimental import pallas as pl
from jax.experimental.pallas import tpu as pltpu


_K = 5            # conv kernel size everywhere in this module
_D2S_MIN_HW = 4   # decoder layers whose input spatial size >= this use the depth-to-space lowering

_ENC = [(1, 16), (16, 32), (32, 64), (64, 128), (128, 256), (256, 512), (512, 1024)]
_DEC = [(1024, 512), (512, 256), (256, 128), (128, 64), (64, 32), (32, 16), (16, 1)]


def _round_up(x, m):
    return (x + m - 1) // m * m


# ----------------------------------------------------------------------------
# Pallas kernel: tiled matmul (bf16 in, f32 accumulate) with fused bias + activation
# ----------------------------------------------------------------------------
def _matmul_bias_act_kernel(a_ref, b_ref, bias_ref, o_ref, acc_ref, *, activation):
    @pl.when(pl.program_id(2) == 0)
    def _():
        acc_ref[...] = jnp.zeros_like(acc_ref)

    acc_ref[...] += jnp.dot(a_ref[...], b_ref[...], preferred_element_type=jnp.float32)

    @pl.when(pl.program_id(2) == pl.num_programs(2) - 1)
    def _():
        out = acc_ref[...] + bias_ref[...]          # f32 epilogue
        if activation == "sin":
            out = jnp.sin(out)
        elif activation == "sigmoid":
            # stable sigmoid; the divide goes to the EUP via approx reciprocal.
            # out = 1 - e/(1+e)  (x>=0)  or  e/(1+e)  (x<0)  -> strictly in (0, 1).
            e = jnp.exp(-jnp.abs(out))
            p = e * pl.reciprocal(1.0 + e, approx=True)
            out = jnp.where(out >= 0, 1.0 - p, p)
        o_ref[...] = out.astype(o_ref.dtype)


def _pick_tiles(M, Kp, Np):
    """Static tile selection (all Python ints)."""
    # tm: big tiles for the big-M / thin-N layers, moderate otherwise
    if Np <= 128:
        tm = 2048 if Kp <= 256 else (1024 if Kp <= 1024 else 512)
    else:
        tm = 256
    tm = min(tm, _round_up(M, 8))
    Mp = _round_up(M, tm)
    # tn: lane-dense (multiple of 128)
    tn = min(256, Np)
    if Mp == tm and Np == tn and Np > 128:
        tn = 128                                   # >= 2 parallel N blocks (v7x megacore)
    if Mp == tm and Np == tn and tm >= 16 and tm % 16 == 0:
        tm //= 2                                   # >= 2 parallel M blocks (v7x megacore)
        Mp = _round_up(M, tm)
    # tk: largest multiple-of-128 divisor of Kp under a VMEM-aware cap
    cap = 2048 if tm <= 128 else (1024 if tm <= 512 else 512)
    tk = 128
    for mult in range(1, Kp // 128 + 1):
        cand = 128 * mult
        if cand <= cap and Kp % cand == 0:
            tk = cand
    return tm, Mp, tn, tk


def fused_matmul_bias_act(a, w_p, b_p, n_out, activation, out_dtype):
    """out = act(a @ w + b)[:, :n_out].

    a   : [M, Kp]  bf16 patches (already zero-padded along K to match w_p)
    w_p : [Kp, Np] bf16 pre-formatted weight (Kp/Np multiples of 128)
    b_p : [1, Np]  f32 pre-formatted bias
    n_out : static Python int (true output channels)
    """
    M, Kp = a.shape
    Kp_w, Np = w_p.shape
    assert Kp == Kp_w, (Kp, Kp_w)

    tm, Mp, tn, tk = _pick_tiles(M, Kp, Np)
    if Mp != M:  # only the tiny M=2 latent layer actually pads here
        a = jnp.pad(a, ((0, Mp - M), (0, 0)))

    kernel = functools.partial(_matmul_bias_act_kernel, activation=activation)
    out = pl.pallas_call(
        kernel,
        out_shape=jax.ShapeDtypeStruct((Mp, Np), out_dtype),
        grid_spec=pltpu.PrefetchScalarGridSpec(
            num_scalar_prefetch=0,
            grid=(Mp // tm, Np // tn, Kp // tk),
            in_specs=[
                pl.BlockSpec((tm, tk), lambda i, j, k: (i, k)),
                pl.BlockSpec((tk, tn), lambda i, j, k: (k, j)),
                pl.BlockSpec((1, tn), lambda i, j, k: (0, j)),
            ],
            out_specs=pl.BlockSpec((tm, tn), lambda i, j, k: (i, j)),
            scratch_shapes=[pltpu.VMEM((tm, tn), jnp.float32)],
        ),
        compiler_params=pltpu.CompilerParams(
            dimension_semantics=("parallel", "parallel", "arbitrary"),
            vmem_limit_bytes=32 * 1024 * 1024,   # headroom on v5e's 16 MiB default; safe on v6e/v7x
        ),
    )(a, w_p, b_p)

    if (Mp, Np) != (M, n_out):
        out = out[:M, :n_out]
    return out


# ----------------------------------------------------------------------------
# im2col glue (pure slicing / padding) — K-padding is fused into the same concatenate
# ----------------------------------------------------------------------------
def _extract_patches(x_nhwc, k, stride, pad_lo, pad_hi, k_pad_to):
    x = jnp.pad(x_nhwc, ((0, 0), (pad_lo, pad_hi), (pad_lo, pad_hi), (0, 0)))
    N, Hp, Wp, C = x.shape
    Ho = (Hp - k) // stride + 1
    Wo = (Wp - k) // stride + 1
    cols = []
    for di in range(k):
        for dj in range(k):
            cols.append(
                x[:, di:di + stride * (Ho - 1) + 1:stride,
                     dj:dj + stride * (Wo - 1) + 1:stride, :]
            )
    if k_pad_to > k * k * C:
        cols.append(jnp.zeros((N, Ho, Wo, k_pad_to - k * k * C), x.dtype))
    p = jnp.concatenate(cols, axis=-1)             # [N, Ho, Wo, k_pad_to], layout (ki, kj, cin)
    return p.reshape(N * Ho * Wo, k_pad_to), (N, Ho, Wo)


def _dilate(x_nhwc, s):
    if s == 1:
        return x_nhwc
    N, H, W, C = x_nhwc.shape
    out = jnp.zeros((N, (H - 1) * s + 1, (W - 1) * s + 1, C), x_nhwc.dtype)
    return out.at[:, ::s, ::s, :].set(x_nhwc)


# ----------------------------------------------------------------------------
# Conv2d / ConvTranspose2d forward (PyTorch semantics) on top of the kernel
# ----------------------------------------------------------------------------
def conv2d(x_nhwc, w_p, b_p, cout, *, stride, padding, activation, out_dtype=jnp.bfloat16):
    patches, (N, Ho, Wo) = _extract_patches(x_nhwc, _K, stride, padding, padding, w_p.shape[0])
    out = fused_matmul_bias_act(patches, w_p, b_p, cout, activation, out_dtype)
    return out.reshape(N, Ho, Wo, cout)


def conv_transpose2d_dilate(x_nhwc, w_p, b_p, cout, *, stride, padding, output_padding,
                            activation, out_dtype=jnp.bfloat16):
    """Zero-dilated stride-1 conv with spatially flipped kernel, asymmetric (k-1-p, k-1-p+op) pad.
    Used only for the tiny latent layers (1x1 / 2x2 inputs)."""
    xd = _dilate(x_nhwc, stride)
    pad_lo = _K - 1 - padding
    pad_hi = _K - 1 - padding + output_padding
    patches, (N, Ho, Wo) = _extract_patches(xd, _K, 1, pad_lo, pad_hi, w_p.shape[0])
    out = fused_matmul_bias_act(patches, w_p, b_p, cout, activation, out_dtype)
    return out.reshape(N, Ho, Wo, cout)


def conv_transpose2d_d2s(x_nhwc, w_p, b_p, cout, *, activation, out_dtype=jnp.bfloat16):
    """ConvTranspose2d(k=5, s=2, p=2, op=1) lowered to a stride-1 3x3 conv producing 4*cout
    channels (one per output sub-pixel phase) followed by depth-to-space. 9x instead of 25x
    im2col and no zero-dilated rows."""
    patches, (N, Hi, Wi) = _extract_patches(x_nhwc, 3, 1, 1, 1, w_p.shape[0])
    out = fused_matmul_bias_act(patches, w_p, b_p, 4 * cout, activation, out_dtype)
    out = out.reshape(N, Hi, Wi, 2, 2, cout)                     # (..., ph, pw, co)
    out = jnp.transpose(out, (0, 1, 3, 2, 4, 5)).reshape(N, 2 * Hi, 2 * Wi, cout)
    return out


# ----------------------------------------------------------------------------
# Parameters: PyTorch-layout init + one-time kernel-friendly preformatting
# ----------------------------------------------------------------------------
def init_params(key):
    params = {"enc": [], "dec": []}
    for cin, cout in _ENC:
        key, kw, kb = jax.random.split(key, 3)
        bound = 1.0 / (cin * _K * _K) ** 0.5
        w = jax.random.uniform(kw, (cout, cin, _K, _K), jnp.float32, -bound, bound)
        b = jax.random.uniform(kb, (cout,), jnp.float32, -bound, bound)
        params["enc"].append((w, b))
    for cin, cout in _DEC:
        key, kw, kb = jax.random.split(key, 3)
        bound = 1.0 / (cin * _K * _K) ** 0.5
        w = jax.random.uniform(kw, (cin, cout, _K, _K), jnp.float32, -bound, bound)
        b = jax.random.uniform(kb, (cout,), jnp.float32, -bound, bound)
        params["dec"].append((w, b))
    return params


def _pad_wb(w2, b):
    K, Nn = w2.shape
    Kp, Np = _round_up(K, 128), _round_up(Nn, 128)
    w_p = jnp.pad(w2, ((0, Kp - K), (0, Np - Nn))).astype(jnp.bfloat16)
    b_p = jnp.pad(b, (0, Np - Nn)).astype(jnp.float32).reshape(1, Np)
    return w_p, b_p


def _prep_conv_weight(w, b):
    # w: (Cout, Cin, k, k)  ->  rows ordered (ki, kj, cin), cols = cout
    Cout, Cin = w.shape[0], w.shape[1]
    w2 = jnp.transpose(w, (2, 3, 1, 0)).reshape(_K * _K * Cin, Cout)
    return _pad_wb(w2, b)


def _prep_deconv_weight_dilate(w, b):
    # w: (Cin, Cout, k, k); spatially flipped, rows ordered (ki, kj, cin)
    Cin, Cout = w.shape[0], w.shape[1]
    w2 = jnp.transpose(w[:, :, ::-1, ::-1], (2, 3, 0, 1)).reshape(_K * _K * Cin, Cout)
    return _pad_wb(w2, b)


def _tap(phase, j):
    # original 5x5 transposed-conv tap used by unified 3x3 window position j for output parity `phase`
    if phase == 0:
        return 4 - 2 * j
    return 5 - 2 * j if j >= 1 else None


def _prep_deconv_weight_d2s(w, b):
    # w: (Cin, Cout, 5, 5) -> combined 3x3 kernel, rows (jh, jw, cin), cols (ph, pw, cout)
    Cin, Cout = w.shape[0], w.shape[1]
    zeros = jnp.zeros((Cin, Cout), w.dtype)
    blocks = []
    for jh in range(3):
        for jw in range(3):
            phs = []
            for ph in range(2):
                pws = []
                for pw in range(2):
                    ki, kj = _tap(ph, jh), _tap(pw, jw)
                    pws.append(zeros if (ki is None or kj is None) else w[:, :, ki, kj])
                phs.append(jnp.stack(pws, axis=1))       # (Cin, 2, Cout)
            tapb = jnp.stack(phs, axis=1)                # (Cin, 2, 2, Cout)
            blocks.append(tapb.reshape(Cin, 4 * Cout))
    w2 = jnp.concatenate(blocks, axis=0)                 # (9*Cin, 4*Cout)
    b2 = jnp.tile(b, 4)                                  # bias replicated per phase
    return _pad_wb(w2, b2)


def prepare_params(params, img_hw=128):
    """Pre-format weights ONCE (transpose / flip / phase-combine / pad / bf16-cast)."""
    prep = {"enc": [], "dec": []}
    for w, b in params["enc"]:
        prep["enc"].append(_prep_conv_weight(w, b))
    hw = img_hw >> len(_ENC)                             # latent spatial size
    for w, b in params["dec"]:
        if hw >= _D2S_MIN_HW:
            prep["dec"].append(_prep_deconv_weight_d2s(w, b))
        else:
            prep["dec"].append(_prep_deconv_weight_dilate(w, b))
        hw *= 2
    return prep


# ----------------------------------------------------------------------------
# Full forward (matches PyTorch ConvolutionalAutoencoder)
# ----------------------------------------------------------------------------
def conv_autoencoder_forward(prep, x_nchw):
    x = jnp.transpose(x_nchw, (0, 2, 3, 1)).astype(jnp.bfloat16)   # NCHW -> NHWC, bf16
    # encoder: Conv2d(5, stride 2, pad 2) + sin; last conv has no activation
    for i, (_cin, cout) in enumerate(_ENC):
        w_p, b_p = prep["enc"][i]
        act = "sin" if i < len(_ENC) - 1 else "none"
        x = conv2d(x, w_p, b_p, cout, stride=2, padding=2, activation=act)
    # decoder: ConvTranspose2d(5, stride 2, pad 2, output_pad 1) + sin; last -> sigmoid
    for i, (cin, cout) in enumerate(_DEC):
        w_p, b_p = prep["dec"][i]
        last = i == len(_DEC) - 1
        act = "sigmoid" if last else "sin"
        out_dtype = jnp.float32 if last else jnp.bfloat16
        hw_in = x.shape[1]                                          # static under jit
        if hw_in >= _D2S_MIN_HW:
            assert w_p.shape[0] == _round_up(9 * cin, 128)          # prep/forward path agreement
            x = conv_transpose2d_d2s(x, w_p, b_p, cout, activation=act, out_dtype=out_dtype)
        else:
            assert w_p.shape[0] == _round_up(_K * _K * cin, 128)
            x = conv_transpose2d_dilate(x, w_p, b_p, cout, stride=2, padding=2,
                                        output_padding=1, activation=act, out_dtype=out_dtype)
    return jnp.transpose(x, (0, 3, 1, 2))                           # NHWC -> NCHW


# ----------------------------------------------------------------------------
# Small numpy references (layout-bug detectors for the GEMM lowerings)
# ----------------------------------------------------------------------------
def _ref_conv2d(x, w, b, stride, padding):
    N, H, W, Cin = x.shape
    Cout, _, k, _ = w.shape
    xp = np.pad(x, ((0, 0), (padding, padding), (padding, padding), (0, 0)))
    Ho = (H + 2 * padding - k) // stride + 1
    Wo = (W + 2 * padding - k) // stride + 1
    y = np.zeros((N, Ho, Wo, Cout), np.float32)
    for oh in range(Ho):
        for ow in range(Wo):
            patch = xp[:, oh * stride:oh * stride + k, ow * stride:ow * stride + k, :]
            y[:, oh, ow, :] = np.einsum("nijc,ocij->no", patch, w)
    return y + b


def _ref_conv_transpose2d(x, w, b, stride, padding, output_padding):
    N, H, W, Cin = x.shape
    _, Cout, k, _ = w.shape
    Ho = (H - 1) * stride - 2 * padding + k + output_padding
    Wo = (W - 1) * stride - 2 * padding + k + output_padding
    y = np.zeros((N, Ho, Wo, Cout), np.float32)
    for ih in range(H):
        for iw in range(W):
            for ki in range(k):
                for kj in range(k):
                    oh = ih * stride - padding + ki
                    ow = iw * stride - padding + kj
                    if 0 <= oh < Ho and 0 <= ow < Wo:
                        y[:, oh, ow, :] += x[:, ih, iw, :] @ w[:, :, ki, kj]
    return y + b


if __name__ == "__main__":
    root = jax.random.PRNGKey(0)
    keys = jax.random.split(root, 8)

    # --- tiny correctness self-checks of the conv / deconv lowerings (bf16-loose tolerance) ---
    xs = jax.random.uniform(keys[0], (1, 6, 6, 3), jnp.float32, -1.0, 1.0)
    wc = jax.random.uniform(keys[1], (4, 3, _K, _K), jnp.float32, -0.3, 0.3)
    bc = jax.random.uniform(keys[2], (4,), jnp.float32, -0.3, 0.3)
    w_p, b_p = _prep_conv_weight(wc, bc)
    got = conv2d(xs.astype(jnp.bfloat16), w_p, b_p, 4, stride=2, padding=2,
                 activation="none", out_dtype=jnp.float32)
    np.testing.assert_allclose(np.asarray(got),
                               _ref_conv2d(np.asarray(xs), np.asarray(wc), np.asarray(bc), 2, 2),
                               rtol=0.1, atol=0.1)

    xt = jax.random.uniform(keys[3], (1, 4, 4, 3), jnp.float32, -1.0, 1.0)
    wt = jax.random.uniform(keys[4], (3, 4, _K, _K), jnp.float32, -0.3, 0.3)
    bt = jax.random.uniform(keys[5], (4,), jnp.float32, -0.3, 0.3)
    w_p, b_p = _prep_deconv_weight_d2s(wt, bt)
    got = conv_transpose2d_d2s(xt.astype(jnp.bfloat16), w_p, b_p, 4,
                               activation="none", out_dtype=jnp.float32)
    np.testing.assert_allclose(np.asarray(got),
                               _ref_conv_transpose2d(np.asarray(xt), np.asarray(wt),
                                                     np.asarray(bt), 2, 2, 1),
                               rtol=0.1, atol=0.1)

    # --- full autoencoder forward: 128x128 input -> (2,1024,1,1) latent -> 128x128 reconstruction ---
    params = init_params(keys[6])
    prep = prepare_params(params, img_hw=128)       # one-time weight reformatting, outside the fwd path
    x = jax.random.uniform(keys[7], (2, 1, 128, 128), jnp.float32)

    fwd = jax.jit(conv_autoencoder_forward)
    y = jax.block_until_ready(fwd(prep, x))

    assert y.shape == (2, 1, 128, 128), y.shape
    assert bool(jnp.all(jnp.isfinite(y)))
    assert bool(jnp.all((y > 0.0) & (y < 1.0)))     # sigmoid output range
    print("KERNEL_OK")
</pallas_src>

<mosaic_0001>
module attributes {stable_mosaic.version = 11 : i64} {
  func.func @_matmul_bias_act_kernel(%arg0: i32, %arg1: i32, %arg2: i32, %arg3: memref<8x128xbf16, #tpu.memory_space<vmem>>, %arg4: memref<128x128xbf16, #tpu.memory_space<vmem>>, %arg5: memref<1x128xf32, #tpu.memory_space<vmem>>, %arg6: memref<8x128xf32, #tpu.memory_space<vmem>>, %arg7: memref<8x128xf32, #tpu.memory_space<vmem>>) attributes {dimension_semantics = [#tpu.dimension_semantics<parallel>, #tpu.dimension_semantics<parallel>, #tpu.dimension_semantics<arbitrary>], iteration_bounds = array<i64: 2, 1, 1>, scalar_prefetch = 0 : i64, scratch_operands = 1 : i64, tpu.core_type = #tpu.core_type<tc>, window_params = [{transform_indices = @transform_0, window_bounds = array<i64: 8, 128>}, {transform_indices = @transform_1, window_bounds = array<i64: 128, 128>}, {transform_indices = @transform_2, window_bounds = array<i64: 1, 128>}, {transform_indices = @transform_3, window_bounds = array<i64: 8, 128>}]} {
    %c0_i32 = arith.constant 0 : i32
    %0 = arith.cmpi eq, %arg2, %c0_i32 : i32
    %1 = arith.extui %0 : i1 to i32
    %c0_i32_0 = arith.constant 0 : i32
    %2 = arith.cmpi ne, %1, %c0_i32_0 : i32
    scf.if %2 {
      %cst_10 = arith.constant 0.000000e+00 : f32
      %12 = vector.broadcast %cst_10 : f32 to vector<8x128xf32>
      %c0_11 = arith.constant 0 : index
      %c0_12 = arith.constant 0 : index
      %13 = vector.load %arg7[%c0_11, %c0_12] : memref<8x128xf32, #tpu.memory_space<vmem>>, vector<8x128xf32>
      tpu.vector_store %arg7[%c0_11, %c0_12], %12 {strides = array<i32>} : memref<8x128xf32, #tpu.memory_space<vmem>>, vector<8x128xf32>,
    } else {
    }
    %c0 = arith.constant 0 : index
    %c0_1 = arith.constant 0 : index
    %3 = vector.load %arg7[%c0, %c0_1] : memref<8x128xf32, #tpu.memory_space<vmem>>, vector<8x128xf32>
    %c0_2 = arith.constant 0 : index
    %c0_3 = arith.constant 0 : index
    %4 = vector.load %arg3[%c0_2, %c0_3] : memref<8x128xbf16, #tpu.memory_space<vmem>>, vector<8x128xbf16>
    %c0_4 = arith.constant 0 : index
    %c0_5 = arith.constant 0 : index
    %5 = vector.load %arg4[%c0_4, %c0_5] : memref<128x128xbf16, #tpu.memory_space<vmem>>, vector<128x128xbf16>
    %cst = arith.constant dense<0.000000e+00> : vector<8x128xf32>
    %6 = tpu.matmul %4, %5, %cst {dimension_numbers = #tpu.dot_dimension_numbers<[1], [0], [0], [1], [0, 0, 1, 1], [], []>} : vector<8x128xbf16>, vector<128x128xbf16>, vector<8x128xf32> -> vector<8x128xf32>
    %7 = arith.addf %3, %6 : vector<8x128xf32>
    %c0_6 = arith.constant 0 : index
    %c0_7 = arith.constant 0 : index
    %8 = vector.load %arg7[%c0_6, %c0_7] : memref<8x128xf32, #tpu.memory_space<vmem>>, vector<8x128xf32>
    tpu.vector_store %arg7[%c0_6, %c0_7], %7 {strides = array<i32>} : memref<8x128xf32, #tpu.memory_space<vmem>>, vector<8x128xf32>,
    %c0_i32_8 = arith.constant 0 : i32
    %9 = arith.cmpi eq, %arg2, %c0_i32_8 : i32
    %10 = arith.extui %9 : i1 to i32
    %c0_i32_9 = arith.constant 0 : i32
    %11 = arith.cmpi ne, %10, %c0_i32_9 : i32
    scf.if %11 {
      %c0_10 = arith.constant 0 : index
      %c0_11 = arith.constant 0 : index
      %12 = vector.load %arg7[%c0_10, %c0_11] : memref<8x128xf32, #tpu.memory_space<vmem>>, vector<8x128xf32>
      %c0_12 = arith.constant 0 : index
      %c0_13 = arith.constant 0 : index
      %13 = vector.load %arg5[%c0_12, %c0_13] : memref<1x128xf32, #tpu.memory_space<vmem>>, vector<1x128xf32>
      %14 = vector.broadcast %13 : vector<1x128xf32> to vector<8x128xf32>
      %15 = arith.addf %12, %14 : vector<8x128xf32>
      %c0_14 = arith.constant 0 : index
      %c0_15 = arith.constant 0 : index
      %16 = vector.load %arg6[%c0_14, %c0_15] : memref<8x128xf32, #tpu.memory_space<vmem>>, vector<8x128xf32>
      tpu.vector_store %arg6[%c0_14, %c0_15], %15 {strides = array<i32>} : memref<8x128xf32, #tpu.memory_space<vmem>>, vector<8x128xf32>,
    } else {
    }
    return
  }
  func.func @transform_0(%arg0: i32, %arg1: i32, %arg2: i32) -> (i32, i32) {
    %c0_i32 = arith.constant 0 : i32
    return %arg0, %arg2 : i32, i32
  }
  func.func @transform_1(%arg0: i32, %arg1: i32, %arg2: i32) -> (i32, i32) {
    %c0_i32 = arith.constant 0 : i32
    return %arg2, %arg1 : i32, i32
  }
  func.func @transform_2(%arg0: i32, %arg1: i32, %arg2: i32) -> (i32, i32) {
    %c0_i32 = arith.constant 0 : i32
    %c0_i32_0 = arith.constant 0 : i32
    return %c0_i32, %arg1 : i32, i32
  }
  func.func @transform_3(%arg0: i32, %arg1: i32, %arg2: i32) -> (i32, i32) {
    %c0_i32 = arith.constant 0 : i32
    return %arg0, %arg1 : i32, i32
  }
}

</mosaic_0001>

<llo_original>
// kernel: tpu_custom_call.1
$region0: #{tpu_custom_call.1}
  #allocation0 [shape = 'u32[]', space=smem, size = 0x4, offset = 0x4, fixed_abs, tag = 'smem constant byte address 0x4 - core index']
  #allocation1 [shape = 'u32[144,128]{1,0:T(1,128)}', space=vmem, size = 0x12000, scoped, tag = 'internal scratch']
  #allocation2 [shape = 'f32[8,128]{1,0:T(8,128)}', space=vmem, size = 0x1000, scoped, tag = 'scratch operand']
  %s0 = inlined_call_operand.hbm [shape: bf16[16,128], index: 0, kind: input, shape index: {}]
  %s1 = inlined_call_operand.hbm [shape: bf16[128,128], index: 1, kind: input, shape index: {}]
  %s2 = inlined_call_operand.vmem [shape: f32[1,128], index: 2, kind: input, shape index: {}]
  %s3 = inlined_call_operand.hbm [shape: f32[16,128], index: 3, kind: output, shape index: {}]
  %s4 = sld [smem:[#allocation0]]
  $region61: #{tpu_custom_call.1} parent=0
    _
  %s6 = ssub.s32 1, %s4
  %s7 = scalar_select 0, %s6, %s4
  $region1: #{tpu_custom_call.1} parent=0
    #allocation3 [shape = 'u8[4096]{0}', space=vmem, size = 0x1000, scoped, tag = 'input window, operand 0']
    #allocation4 [shape = 's32[2]{0}', space=sflag, size = 0x8, scoped, tag = 'scoped memory for tpu_custom_call.1']
    #allocation5 [shape = 's32[2]{0}', space=sflag, size = 0x8, scoped, tag = 'scoped memory for tpu_custom_call.1']
    #allocation6 [shape = 'u8[32768]{0}', space=vmem, size = 0x8000, scoped, tag = 'input window, operand 1, single buffered']
    #allocation7 [shape = 's32[1]{0}', space=sflag, size = 0x4, scoped, tag = 'scoped memory for tpu_custom_call.1']
    #allocation8 [shape = 'u8[8192]{0}', space=vmem, size = 0x2000, scoped, tag = 'output window, operand 0']
    %8 = vsyncpa [#allocation4], 0
    %s9 = scalar_lea.sflag [#allocation4], 1
    %10 = vsyncpa %s9, 0
    %11 = vsyncpa [#allocation7], 0
    %12 = vsyncpa [#allocation5], 0
    %s13 = scalar_lea.sflag [#allocation5], 1
    %14 = vsyncpa %s13, 0
    loop: start=0, step=1, limit=4
    $region2: #{tpu_custom_call.1} parent=1 // loop_pre_header
      _
    $region3: #{tpu_custom_call.1} parent=1 // loop_header
      %s16 = sphi 0, %s20
      %p17 = scmp.ge.s32.totalorder %s16, 4
      %s23 = sphi 0, %s42
      %s24 = sphi 0, %s38
      %s25 = sphi 0, %s34
      %s26 = sphi 0, %s23
      %s27 = sphi 0, %s24
      %s28 = sphi 0, %s25
      %s29 = sphi 0, %s26
      %s30 = sphi 0, %s27
      %s31 = sphi 0, %s28
      %s47 = sphi 0, %s49
      %s50 = sphi 0, %s47
      %s51 = sphi 0, %s50
      %s67 = sphi 0, %s51
      %s75 = sphi 0, %s77
      %s78 = sphi 0, %s75
      %s79 = sphi 0, %s78
      %s95 = sphi 0, %s79
      %s101 = sphi 0, %s103
      %s104 = sphi 0, %s101
      %s105 = sphi 0, %s104
      %s121 = sphi 0, %s105
      %s129 = sphi 0, %s131
      %s132 = sphi 0, %s129
      %s133 = sphi 0, %s132
      %s149 = sphi 0, %s133
    $region4: #{tpu_custom_call.1} parent=1 // loop_header_branch
      %19 = sbr.rel (%p17) target = $region8
    $region5: #{tpu_custom_call.1} parent=1 // loop_body
      %s21 = ssub.s32 %s16, 1
      %s22 = ssub.s32 %s16, 2
      %s32 = sadd.s32 1, %s25
      %p33 = scmp.ge.s32.totalorder %s32, 1
      %s34 = scalar_select %p33, 0, %s32
      %s35 = sadd.s32 1, %s24
      %s36 = scalar_select %p33, %s35, %s24
      %p37 = scmp.ge.s32.totalorder %s36, 1
      %s38 = scalar_select %p37, 0, %s36
      %s39 = sadd.s32 1, %s23
      %s40 = scalar_select %p37, %s39, %s23
      %p41 = scmp.ge.s32.totalorder %s40, 2
      %s42 = scalar_select %p41, 0, %s40
      %s43 = ssub.s32 %s23, %s42
      %s44 = ssub.s32 %s25, %s34
      %s45 = sor.u32 %s43, %s44
      %p46 = scmp.eq.s32.totalorder %s45, 0
      %s48 = sadd.s32 %s47, 1
      %s49 = scalar_select %p46, %s47, %s48
      %p52 = pneg %p46
      %p53 = scmp.eq.s32.totalorder %s16, 1
      %p54 = por %p52, %p53
      %p55 = scmp.ne.s32.totalorder %s47, %s50
      %p56 = scmp.eq.s32.totalorder %s16, 0
      %p57 = por %p55, %p56
      %p58 = scmp.ne.s32.totalorder %s47, %s50
      %p59 = scmp.eq.s32.totalorder %s21, 1
      %p60 = por %p58, %p59
      %p61 = scmp.ne.s32.totalorder %s50, %s51
      %p62 = scmp.eq.s32.totalorder %s21, 0
      %p63 = por %p61, %p62
      %p64 = scmp.ne.s32.totalorder %s50, %s51
      %p65 = scmp.eq.s32.totalorder %s22, 1
      %p66 = por %p64, %p65
      %p68 = scmp.ne.s32.totalorder %s51, %s67
      %p69 = scmp.eq.s32.totalorder %s22, 0
      %p70 = por %p68, %p69
      %s71 = ssub.s32 %s25, %s34
      %s72 = ssub.s32 %s24, %s38
      %s73 = sor.u32 %s71, %s72
      %p74 = scmp.eq.s32.totalorder %s73, 0
      %s76 = sadd.s32 %s75, 1
      %s77 = scalar_select %p74, %s75, %s76
      %p80 = pneg %p74
      %p81 = scmp.eq.s32.totalorder %s16, 1
      %p82 = por %p80, %p81
      %p83 = scmp.ne.s32.totalorder %s75, %s78
      %p84 = scmp.eq.s32.totalorder %s16, 0
      %p85 = por %p83, %p84
      %p86 = scmp.ne.s32.totalorder %s75, %s78
      %p87 = scmp.eq.s32.totalorder %s21, 1
      %p88 = por %p86, %p87
      %p89 = scmp.ne.s32.totalorder %s78, %s79
      %p90 = scmp.eq.s32.totalorder %s21, 0
      %p91 = por %p89, %p90
      %p92 = scmp.ne.s32.totalorder %s78, %s79
      %p93 = scmp.eq.s32.totalorder %s22, 1
      %p94 = por %p92, %p93
      %p96 = scmp.ne.s32.totalorder %s79, %s95
      %p97 = scmp.eq.s32.totalorder %s22, 0
      %p98 = por %p96, %p97
      %s99 = ssub.s32 %s24, %s38
      %p100 = scmp.eq.s32.totalorder %s99, 0
      %s102 = sadd.s32 %s101, 1
      %s103 = scalar_select %p100, %s101, %s102
      %p106 = pneg %p100
      %p107 = scmp.eq.s32.totalorder %s16, 1
      %p108 = por %p106, %p107
      %p109 = scmp.ne.s32.totalorder %s101, %s104
      %p110 = scmp.eq.s32.totalorder %s16, 0
      %p111 = por %p109, %p110
      %p112 = scmp.ne.s32.totalorder %s101, %s104
      %p113 = scmp.eq.s32.totalorder %s21, 1
      %p114 = por %p112, %p113
      %p115 = scmp.ne.s32.totalorder %s104, %s105
      %p116 = scmp.eq.s32.totalorder %s21, 0
      %p117 = por %p115, %p116
      %p118 = scmp.ne.s32.totalorder %s104, %s105
      %p119 = scmp.eq.s32.totalorder %s22, 1
      %p120 = por %p118, %p119
      %p122 = scmp.ne.s32.totalorder %s105, %s121
      %p123 = scmp.eq.s32.totalorder %s22, 0
      %p124 = por %p122, %p123
      %s125 = ssub.s32 %s23, %s42
      %s126 = ssub.s32 %s24, %s38
      %s127 = sor.u32 %s125, %s126
      %p128 = scmp.eq.s32.totalorder %s127, 0
      %s130 = sadd.s32 %s129, 1
      %s131 = scalar_select %p128, %s129, %s130
      %p134 = pneg %p128
      %p135 = scmp.eq.s32.totalorder %s16, 1
      %p136 = por %p134, %p135
      %p137 = scmp.ne.s32.totalorder %s129, %s132
      %p138 = scmp.eq.s32.totalorder %s16, 0
      %p139 = por %p137, %p138
      %p140 = scmp.ne.s32.totalorder %s129, %s132
      %p141 = scmp.eq.s32.totalorder %s21, 1
      %p142 = por %p140, %p141
      %p143 = scmp.ne.s32.totalorder %s132, %s133
      %p144 = scmp.eq.s32.totalorder %s21, 0
      %p145 = por %p143, %p144
      %p146 = scmp.ne.s32.totalorder %s132, %s133
      %p147 = scmp.eq.s32.totalorder %s22, 1
      %p148 = por %p146, %p147
      %p150 = scmp.ne.s32.totalorder %s133, %s149
      %p151 = scmp.eq.s32.totalorder %s22, 0
      %p152 = por %p150, %p151
      %p153 = scmp.le.s32.totalorder 1, %s16
      %p154 = scmp.lt.s32.totalorder %s16, 3
      %p155 = pnand %p153, %p154
      %p156 = pneg %p155
      // Predicated region
      $region9: #{tpu_custom_call.1} parent=5 // pred_check
        _
      $region10: #{tpu_custom_call.1} parent=5 // pred_check_branch
        %158 = sbr.rel (%p155) target = $region12
      $region11: #{tpu_custom_call.1} parent=5 // pred_region
        %s159 = ssub.s32 %s16, 1
        // Predicated region
        $region13: #{tpu_custom_call.1} parent=11 // pred_check
          %p160 = pneg %p91
        $region14: #{tpu_custom_call.1} parent=11 // pred_check_branch
          %162 = sbr.rel (%p160) target = $region16
        $region15: #{tpu_custom_call.1} parent=11 // pred_region
          %s163 = smul.u32 16, %s28
          %s165 = ssub.s32 1024, 1024
          %166 = vsyncadd [#allocation7], %s165
          %s167 = sadd.s32 %s27, %s163
          %s168 = smul.addr %s167, 64
          %s169 = scalar_lea.hbm %s1, %s168
          %s170 = sshll.u32 [#allocation6], 4
          %s171 = int_to_ptr.vmem [resolvable:$true] %s170
          %176 = dma.hbm_to_vmem [thread:$0]  %s169, 1024, %s171, [#allocation7], 64, 64, 4
        $region16: #{tpu_custom_call.1} parent=11 // pred_fallthru
          _
        // Predicated region
        $region17: #{tpu_custom_call.1} parent=11 // pred_check
          %p177 = pneg %p117
        $region18: #{tpu_custom_call.1} parent=11 // pred_check_branch
          %179 = sbr.rel (%p177) target = $region20
        $region19: #{tpu_custom_call.1} parent=11 // pred_region
          %p180 = scmp.lt.s32.totalorder %s27, 0
          %s181 = scalar_select %p180, %s27, 0
          %s182 = scalar_lea.vmem %s2, %s181
        $region20: #{tpu_custom_call.1} parent=11 // pred_fallthru
          _
      $region12: #{tpu_custom_call.1} parent=5 // pred_fallthru
        _
      %p183 = scmp.lt.s32.totalorder %s16, 2
      // Predicated region
      $region21: #{tpu_custom_call.1} parent=5 // pred_check
        %p184 = pneg %p183
      $region22: #{tpu_custom_call.1} parent=5 // pred_check_branch
        %186 = sbr.rel (%p184) target = $region24
      $region23: #{tpu_custom_call.1} parent=5 // pred_region
        // Predicated region
        $region25: #{tpu_custom_call.1} parent=23 // pred_check
          %p187 = pneg %p57
        $region26: #{tpu_custom_call.1} parent=23 // pred_check_branch
          %189 = sbr.rel (%p187) target = $region28
        $region27: #{tpu_custom_call.1} parent=23 // pred_region
          %s190 = sand.u32 %s47, 1
          %s191 = scalar_lea.sflag [#allocation4], %s190
          %s192 = sand.u32 %s47, 1
          %s193 = smul.addr %s192, 4
          %s194 = scalar_lea.vmem [#allocation3], %s193
          %s196 = ssub.s32 64, 64
          %197 = vsyncadd %s191, %s196
          %s198 = sadd.s32 %s25, %s23
          %s199 = smul.addr %s198, 64
          %s200 = scalar_lea.hbm %s0, %s199
          %s202 = sshll.u32 %s194, 4
          %s203 = int_to_ptr.vmem [resolvable:$true] %s202
          %205 = dma.hbm_to_vmem [thread:$0]  %s200, 64, %s203, %s191
        $region28: #{tpu_custom_call.1} parent=23 // pred_fallthru
          _
      $region24: #{tpu_custom_call.1} parent=5 // pred_fallthru
        _
      %p206 = scmp.le.s32.totalorder 1, %s16
      %p207 = scmp.lt.s32.totalorder %s16, 3
      %p208 = pnand %p206, %p207
      %p209 = pneg %p208
      // Predicated region
      $region29: #{tpu_custom_call.1} parent=5 // pred_check
        _
      $region30: #{tpu_custom_call.1} parent=5 // pred_check_branch
        %211 = sbr.rel (%p208) target = $region32
      $region31: #{tpu_custom_call.1} parent=5 // pred_region
        %s212 = ssub.s32 %s16, 1
        %s213 = sand.u32 %s50, 1
        %s214 = scalar_lea.sflag [#allocation4], %s213
        %s215 = sand.u32 %s50, 1
        %s216 = smul.addr %s215, 4
        %s217 = scalar_lea.vmem [#allocation3], %s216
        // Predicated region
        $region33: #{tpu_custom_call.1} parent=31 // pred_check
          %p218 = pneg %p63
        $region34: #{tpu_custom_call.1} parent=31 // pred_check_branch
          %220 = sbr.rel (%p218) target = $region36
        $region35: #{tpu_custom_call.1} parent=31 // pred_region
          %221 = dma.done %s214, 64
        $region36: #{tpu_custom_call.1} parent=31 // pred_fallthru
          _
        // Predicated region
        $region37: #{tpu_custom_call.1} parent=31 // pred_check
          %p222 = pneg %p91
        $region38: #{tpu_custom_call.1} parent=31 // pred_check_branch
          %224 = sbr.rel (%p222) target = $region40
        $region39: #{tpu_custom_call.1} parent=31 // pred_region
          %225 = dma.done [#allocation7], 1024
        $region40: #{tpu_custom_call.1} parent=31 // pred_fallthru
          _
        %s226 = sand.u32 %s50, 1
        %s227 = scalar_lea.sflag [#allocation4], %s226
        %s228 = sand.u32 %s50, 1
        %s229 = smul.addr %s228, 4
        %s230 = scalar_lea.vmem [#allocation3], %s229
        %p231 = pneg %p63
        %p232 = pneg %p60
        %p233 = pneg %p91
        %p234 = pneg %p88
        %p235 = scmp.lt.s32.totalorder %s27, 0
        %s236 = scalar_select %p235, %s27, 0
        %s237 = scalar_lea.vmem %s2, %s236
        %p238 = pneg %p117
        %p239 = pneg %p114
        %p240 = pneg %p145
        %p241 = pneg %p142
        %s242 = sand.u32 %s132, 1
        %s243 = scalar_lea.sflag [#allocation5], %s242
        %s244 = sand.u32 %s132, 1
        %s245 = smul.addr %s244, 8
        %s246 = scalar_lea.vmem [#allocation8], %s245
        %s247 = smul.u32 16, %s28
        %p248 = scmp.lt.s32.totalorder %s27, 0
        %s249 = scalar_select %p248, %s27, 0
        %s250 = scalar_lea.vmem %s2, %s249
        %p252 = scmp.eq.s32.totalorder %s28, 0
        // Predicated region
        $region41: #{tpu_custom_call.1} parent=31 // pred_check
          %p253 = pneg %p252
        $region42: #{tpu_custom_call.1} parent=31 // pred_check_branch
          %255 = sbr.rel (%p253) target = $region44
        $region43: #{tpu_custom_call.1} parent=31 // pred_region
          %256 = vst [vmem:[#allocation2] sm:$0xff] 0.0
        $region44: #{tpu_custom_call.1} parent=31 // pred_fallthru
          _
        %v257 = vld [vmem:[#allocation2] sm:$0xff]
        %v258 = vld [vmem:[%s217] sm:$0xf]
        %v259 = vld [vmem:[#allocation6] sm:$0xf]
        %v260 = vld [vmem:[#allocation6 + $0x4] sm:$0xf]
        %v261 = vld [vmem:[#allocation6 + $0x8] sm:$0xf]
        %v262 = vld [vmem:[#allocation6 + $0xc] sm:$0xf]
        %v263 = vld [vmem:[#allocation6 + $0x10] sm:$0xf]
        %v264 = vld [vmem:[#allocation6 + $0x14] sm:$0xf]
        %v265 = vld [vmem:[#allocation6 + $0x18] sm:$0xf]
        %v266 = vld [vmem:[#allocation6 + $0x1c] sm:$0xf]
        %v267 = vld [vmem:[#allocation6 + $0x20] sm:$0xf]
        %v268 = vld [vmem:[#allocation6 + $0x24] sm:$0xf]
        %v269 = vld [vmem:[#allocation6 + $0x28] sm:$0xf]
        %v270 = vld [vmem:[#allocation6 + $0x2c] sm:$0xf]
        %v271 = vld [vmem:[#allocation6 + $0x30] sm:$0xf]
        %v272 = vld [vmem:[#allocation6 + $0x34] sm:$0xf]
        %v273 = vld [vmem:[#allocation6 + $0x38] sm:$0xf]
        %v274 = vld [vmem:[#allocation6 + $0x3c] sm:$0xf]
        %v291 = vunpack.c.l.b16 %v259
        %v292 = vunpack.c.l.b16 %v260
        %v293 = vunpack.c.l.b16 %v261
        %v294 = vunpack.c.l.b16 %v262
        %v295 = vunpack.c.l.b16 %v263
        %v296 = vunpack.c.l.b16 %v264
        %v297 = vunpack.c.l.b16 %v265
        %v298 = vunpack.c.l.b16 %v266
        %v299 = vunpack.c.l.b16 %v267
        %v300 = vunpack.c.l.b16 %v268
        %v301 = vunpack.c.l.b16 %v269
        %v302 = vunpack.c.l.b16 %v270
        %v303 = vunpack.c.l.b16 %v271
        %v304 = vunpack.c.l.b16 %v272
        %v305 = vunpack.c.l.b16 %v273
        %v306 = vunpack.c.l.b16 %v274
        %v307 = vpack.c.b16 %v292, %v291
        %v308 = vpack.c.b16 %v294, %v293
        %v309 = vpack.c.b16 %v296, %v295
        %v310 = vpack.c.b16 %v298, %v297
        %v311 = vpack.c.b16 %v300, %v299
        %v312 = vpack.c.b16 %v302, %v301
        %v313 = vpack.c.b16 %v304, %v303
        %v314 = vpack.c.b16 %v306, %v305
        %323 = vmatprep.subr.bf16.mxu0 0
        %324 = vmatpush1.bf16.msra.mxu0 %v314
        %325 = vmatprep.subr.bf16.mxu0 0
        %326 = vmatpush1.bf16.msra.mxu0 %v313
        %327 = vmatprep.subr.bf16.mxu0 0
        %328 = vmatpush1.bf16.msra.mxu0 %v312
        %329 = vmatprep.subr.bf16.mxu0 0
        %330 = vmatpush1.bf16.msra.mxu0 %v311
        %331 = vmatprep.subr.bf16.mxu0 0
        %332 = vmatpush1.bf16.msra.mxu0 %v310
        %333 = vmatprep.subr.bf16.mxu0 0
        %334 = vmatpush1.bf16.msra.mxu0 %v309
        %335 = vmatprep.subr.bf16.mxu0 0
        %336 = vmatpush1.bf16.msra.mxu0 %v308
        %337 = vmatprep.subr.bf16.mxu0 0
        %338 = vmatpush1.bf16.msra.mxu0 %v307
        %339 = vmatprep.subr.bf16.mxu0 0
        %340 = vmatpush2.bf16.msra.mxu0 0
        %341 = vmatprep.subr.bf16.mxu0 0
        %342 = vmatpush2.bf16.msra.mxu0 0
        %343 = vmatprep.subr.bf16.mxu0 0
        %344 = vmatpush2.bf16.msra.mxu0 0
        %345 = vmatprep.subr.bf16.mxu0 0
        %346 = vmatpush2.bf16.msra.mxu0 0
        %347 = vmatprep.subr.bf16.mxu0 0
        %348 = vmatpush2.bf16.msra.mxu0 0
        %349 = vmatprep.subr.bf16.mxu0 0
        %350 = vmatpush2.bf16.msra.mxu0 0
        %351 = vmatprep.subr.bf16.mxu0 0
        %352 = vmatpush2.bf16.msra.mxu0 0
        %353 = vmatprep.subr.bf16.mxu0 0
        %354 = vmatpush2.bf16.msra.mxu0 0
        %355 = vmatprep.mubr.bf16.mxu0 0
        %356 = vmatmul.mubr.bf16.gmra.mxu0 %v258
        %v357 = vpop.f32.mrf.mxu0
        %v358 = vadd.f32 0.0, %v357
        %v359 = vpop.f32.mrf.mxu0
        %v360 = vpop.f32.mrf.mxu0
        %v361 = vpop.f32.mrf.mxu0
        %362 = vdwg.mxu0
        %v363 = vadd.f32 %v257, %v358
        %364 = vst [vmem:[#allocation2] sm:$0xff] %v363
        // Predicated region
        $region45: #{tpu_custom_call.1} parent=31 // pred_check
          %p365 = pneg %p252
        $region46: #{tpu_custom_call.1} parent=31 // pred_check_branch
          %367 = sbr.rel (%p365) target = $region48
        $region47: #{tpu_custom_call.1} parent=31 // pred_region
          %v368 = vld [vmem:[#allocation2] sm:$0xff]
          %v369 = vld [vmem:[%s250] sm:$0x1]
          %v371 = vlaneseq
          %v372 = vshrl.u32 %v371, 7
          %v373 = vsub.s32 0, %v372
          %v374 = vrot.slane %v369, %v373
          %v376 = vadd.f32 %v368, %v374
          %377 = vst [vmem:[%s246] sm:$0xff] %v376
        $region48: #{tpu_custom_call.1} parent=31 // pred_fallthru
          _
        %s378 = sand.u32 %s132, 1
        %s379 = scalar_lea.sflag [#allocation5], %s378
        %s380 = sand.u32 %s132, 1
        %s381 = smul.addr %s380, 8
        %s382 = scalar_lea.vmem [#allocation8], %s381
        // Predicated region
        $region49: #{tpu_custom_call.1} parent=31 // pred_check
          %p383 = pneg %p142
        $region50: #{tpu_custom_call.1} parent=31 // pred_check_branch
          %385 = sbr.rel (%p383) target = $region52
        $region51: #{tpu_custom_call.1} parent=31 // pred_region
          %s387 = ssub.s32 128, 128
          %388 = vsyncadd %s379, %s387
          %s389 = sadd.s32 %s27, %s26
          %s390 = smul.addr %s389, 128
          %s391 = scalar_lea.hbm %s3, %s390
          %s393 = sshll.u32 %s382, 4
          %s394 = int_to_ptr.vmem [resolvable:$true] %s393
          %396 = dma.vmem_to_hbm [thread:$0]  %s394, 128, %s391, %s379
        $region52: #{tpu_custom_call.1} parent=31 // pred_fallthru
          _
      $region32: #{tpu_custom_call.1} parent=5 // pred_fallthru
        _
      %p397 = scmp.le.s32.totalorder 2, %s16
      // Predicated region
      $region53: #{tpu_custom_call.1} parent=5 // pred_check
        %p398 = pneg %p397
      $region54: #{tpu_custom_call.1} parent=5 // pred_check_branch
        %400 = sbr.rel (%p398) target = $region56
      $region55: #{tpu_custom_call.1} parent=5 // pred_region
        %s401 = ssub.s32 %s16, 2
        // Predicated region
        $region57: #{tpu_custom_call.1} parent=55 // pred_check
          %p402 = pneg %p148
        $region58: #{tpu_custom_call.1} parent=55 // pred_check_branch
          %404 = sbr.rel (%p402) target = $region60
        $region59: #{tpu_custom_call.1} parent=55 // pred_region
          %s405 = sand.u32 %s133, 1
          %s406 = scalar_lea.sflag [#allocation5], %s405
          %s407 = sand.u32 %s133, 1
          %s408 = smul.addr %s407, 8
          %s409 = scalar_lea.vmem [#allocation8], %s408
          %410 = dma.done %s406, 128
        $region60: #{tpu_custom_call.1} parent=55 // pred_fallthru
          _
      $region56: #{tpu_custom_call.1} parent=5 // pred_fallthru
        _
    $region6: #{tpu_custom_call.1} parent=1 // loop_footer
      %s20 = sadd.s32 1, %s16
    $region7: #{tpu_custom_call.1} parent=1 // loop_footer_branch
      %15 = sbr.rel target = $region3
    $region8: #{tpu_custom_call.1} parent=1 // loop_exit
      _
    %411 = vsyncpa [#allocation4], 1
    %s412 = scalar_lea.sflag [#allocation4], 1
    %413 = vsyncpa %s412, 1
    %414 = vsyncpa [#allocation7], 1
    %415 = vsyncpa [#allocation5], 1
    %s416 = scalar_lea.sflag [#allocation5], 1
    %417 = vsyncpa %s416, 1

</llo_original>
